<compile_context>
chip_gen: v7x
topology: tpu7x:2x2x1
jax: 0.10.0
libtpu: 0.0.40
codegen_flags: <defaults>
</compile_context>

<pallas_src>
import functools
import math

import jax
import jax.numpy as jnp
from jax import lax
from jax.experimental import pallas as pl
from jax.experimental.pallas import tpu as pltpu

_NEG_BIG = -1e30  # finite "-inf" for padded key columns (avoids exp/NaN issues)


def _round_up(x, m):
    return (x + m - 1) // m * m


# ---------------------------------------------------------------------------
# Single-tile kernel: whole (S, S) score block per batch element, no scratch.
# ---------------------------------------------------------------------------
def _attn_single_tile_kernel(q_ref, k_ref, v_ref, mask_ref, o_ref, *, scale):
    q = q_ref[...]          # (S, Dp)  input dtype (bf16 stays bf16 on the MXU)
    k = k_ref[...]          # (S, Dp)
    v = v_ref[...]          # (S, Dp)

    # Q @ K^T as a trans-B contraction (no explicit K transpose), f32 accum.
    s = lax.dot_general(q, k,
                        dimension_numbers=(((1,), (1,)), ((), ())),
                        preferred_element_type=jnp.float32)
    s = s * scale + mask_ref[...].astype(jnp.float32)

    # Plain row softmax: a single KV tile needs no online-softmax machinery.
    m = jnp.max(s, axis=-1, keepdims=True)
    p = jnp.exp(s - m)
    l = jnp.sum(p, axis=-1, keepdims=True)

    o = lax.dot_general(p.astype(v.dtype), v,
                        dimension_numbers=(((1,), (0,)), ((), ())),
                        preferred_element_type=jnp.float32)
    # Exact reciprocal: runs once per tile, essentially free.
    o_ref[...] = (o * pl.reciprocal(l, approx=False)).astype(o_ref.dtype)


# ---------------------------------------------------------------------------
# Flash kernel: online softmax across the KV grid axis (scratch-resident).
# ---------------------------------------------------------------------------
def _attn_flash_kernel(q_ref, k_ref, v_ref, mask_ref, o_ref,
                       qs_sc, m_sc, l_sc, acc_sc, *, scale):
    kv = pl.program_id(2)

    @pl.when(kv == 0)
    def _():
        # Q block is resident across the KV axis: scale once (hoisted) and
        # keep it in the MXU input dtype instead of rescaling every KV step.
        qs_sc[...] = (q_ref[...].astype(jnp.float32) * scale).astype(qs_sc.dtype)
        # -inf matches torch.softmax semantics for fully -inf masked rows.
        m_sc[...] = jnp.full(m_sc.shape, -jnp.inf, dtype=m_sc.dtype)
        l_sc[...] = jnp.zeros(l_sc.shape, dtype=l_sc.dtype)
        acc_sc[...] = jnp.zeros(acc_sc.shape, dtype=acc_sc.dtype)

    k = k_ref[...]          # (TK, Dp)
    v = v_ref[...]          # (TK, Dp)

    s = lax.dot_general(qs_sc[...], k,
                        dimension_numbers=(((1,), (1,)), ((), ())),
                        preferred_element_type=jnp.float32)
    s = s + mask_ref[...].astype(jnp.float32)

    # ---- online (streaming) softmax update ----
    m_prev = m_sc[...]
    m_new = jnp.maximum(m_prev, jnp.max(s, axis=-1, keepdims=True))
    alpha = jnp.exp(m_prev - m_new)
    p = jnp.exp(s - m_new)
    # TODO(synk): on v6e/v7x, if the EUP slot saturates, compute these exps on
    # bf16 operands (keep l/acc accumulation in f32).

    l_sc[...] = alpha * l_sc[...] + jnp.sum(p, axis=-1, keepdims=True)
    acc_sc[...] = alpha * acc_sc[...] + lax.dot_general(
        p.astype(v.dtype), v,
        dimension_numbers=(((1,), (0,)), ((), ())),
        preferred_element_type=jnp.float32)
    m_sc[...] = m_new

    # ---- finalize on the last KV step ----
    @pl.when(kv == pl.num_programs(2) - 1)
    def _():
        inv_l = pl.reciprocal(l_sc[...], approx=True)   # EUP slot, ~free
        o_ref[...] = (acc_sc[...] * inv_l).astype(o_ref.dtype)


def attention(Q, K, V1, mask, *, tq=256, tk=512, single_tile_max_s=512):
    B, S, D = Q.shape
    assert K.shape == (B, S, D) and V1.shape == (B, S, D)
    assert mask.shape == (B, S, S)

    scale = 1.0 / math.sqrt(D)

    # Zero-pad the head dim to a multiple of 128: lane-dense output stores
    # (unmasked vst) and clean MXU shapes. Zero columns change neither Q@K^T
    # nor attn@V; the padded output columns are sliced off afterwards.
    Dp = _round_up(D, 128)
    if Dp != D:
        dpad = [(0, 0), (0, 0), (0, Dp - D)]
        Qp, Kp, Vp = (jnp.pad(x, dpad) for x in (Q, K, V1))
    else:
        Qp, Kp, Vp = Q, K, V1

    # ---------------- single-KV-tile path (small S) ----------------
    if S <= single_tile_max_s:
        out = pl.pallas_call(
            functools.partial(_attn_single_tile_kernel, scale=scale),
            out_shape=jax.ShapeDtypeStruct((B, S, Dp), Q.dtype),
            grid=(B,),
            in_specs=[
                pl.BlockSpec((None, S, Dp), lambda b: (b, 0, 0)),
                pl.BlockSpec((None, S, Dp), lambda b: (b, 0, 0)),
                pl.BlockSpec((None, S, Dp), lambda b: (b, 0, 0)),
                pl.BlockSpec((None, S, S), lambda b: (b, 0, 0)),
            ],
            out_specs=pl.BlockSpec((None, S, Dp), lambda b: (b, 0, 0)),
            compiler_params=pltpu.CompilerParams(
                dimension_semantics=("parallel",)),
        )(Qp, Kp, Vp, mask)
        return out[..., :D] if Dp != D else out

    # ---------------- flash path (large S) ----------------
    # Hardware-aligned tiles: TQ multiple of 8 (also 16 for bf16), TK multiple
    # of 128. Pad each sequence axis independently instead of taking arbitrary
    # divisors of S.
    TQ = min(tq, _round_up(S, 8))
    TK = min(tk, _round_up(S, 128))
    Sq = _round_up(S, TQ)
    Sk = _round_up(S, TK)

    if Sq != S:
        Qp = jnp.pad(Qp, [(0, 0), (0, Sq - S), (0, 0)])
    if Sk != S:
        Kp = jnp.pad(Kp, [(0, 0), (0, Sk - S), (0, 0)])
        Vp = jnp.pad(Vp, [(0, 0), (0, Sk - S), (0, 0)])
    maskp = mask
    if Sk != S:   # padded keys must never win the softmax
        maskp = jnp.pad(maskp, [(0, 0), (0, 0), (0, Sk - S)],
                        constant_values=_NEG_BIG)
    if Sq != S:   # padded query rows are discarded; keep them finite (no NaN)
        maskp = jnp.pad(maskp, [(0, 0), (0, Sq - S), (0, 0)],
                        constant_values=_NEG_BIG)

    # VMEM budget: double-buffered I/O tiles + scratch, capped v7x-safe
    # (48 MiB < 64 MiB physical per TensorCore on v7x).
    itemsize = jnp.dtype(Q.dtype).itemsize
    mask_itemsize = jnp.dtype(mask.dtype).itemsize
    io_bytes = 2 * ((2 * TQ * Dp + 2 * TK * Dp) * itemsize
                    + TQ * TK * mask_itemsize)
    scratch_bytes = TQ * Dp * itemsize + (2 * TQ + TQ * Dp) * 4
    vmem_limit = int(min(48 * 2**20,
                         max(32 * 2**20, 2 * (io_bytes + scratch_bytes))))

    # TODO(synk): on bandwidth-bound v5e, raise tq to 512 and consider a bf16
    # mask and pipeline_mode=pl.Buffered(3) on the mask stream.
    out = pl.pallas_call(
        functools.partial(_attn_flash_kernel, scale=scale),
        out_shape=jax.ShapeDtypeStruct((B, Sq, Dp), Q.dtype),
        grid=(B, Sq // TQ, Sk // TK),
        in_specs=[
            pl.BlockSpec((None, TQ, Dp), lambda b, qi, ki: (b, qi, 0)),
            pl.BlockSpec((None, TK, Dp), lambda b, qi, ki: (b, ki, 0)),
            pl.BlockSpec((None, TK, Dp), lambda b, qi, ki: (b, ki, 0)),
            pl.BlockSpec((None, TQ, TK), lambda b, qi, ki: (b, qi, ki)),
        ],
        out_specs=pl.BlockSpec((None, TQ, Dp), lambda b, qi, ki: (b, qi, 0)),
        scratch_shapes=[
            pltpu.VMEM((TQ, Dp), Q.dtype),       # pre-scaled resident Q tile
            pltpu.VMEM((TQ, 1), jnp.float32),    # running max m
            pltpu.VMEM((TQ, 1), jnp.float32),    # running denom l
            pltpu.VMEM((TQ, Dp), jnp.float32),   # running output acc
        ],
        compiler_params=pltpu.CompilerParams(
            dimension_semantics=("parallel", "parallel", "arbitrary"),
            vmem_limit_bytes=vmem_limit,
        ),
    )(Qp, Kp, Vp, maskp)

    if Sq != S or Dp != D:
        out = out[:, :S, :D]
    return out


def _reference(Q, K, V1, mask):
    s = jnp.einsum("bqd,bkd->bqk", Q.astype(jnp.float32),
                   K.astype(jnp.float32)) / math.sqrt(Q.shape[-1])
    s = s + mask.astype(jnp.float32)
    attn = jax.nn.softmax(s, axis=-1)
    return jnp.einsum("bqk,bkd->bqd", attn,
                      V1.astype(jnp.float32)).astype(Q.dtype)


if __name__ == "__main__":
    B, S, D = 2, 8, 32
    key = jax.random.PRNGKey(0)
    kq, kk, kv_, km = jax.random.split(key, 4)
    Q = jax.random.normal(kq, (B, S, D), dtype=jnp.float32)
    K = jax.random.normal(kk, (B, S, D), dtype=jnp.float32)
    V1 = jax.random.normal(kv_, (B, S, D), dtype=jnp.float32)
    mask = jax.random.normal(km, (B, S, S), dtype=jnp.float32)

    out = attention(Q, K, V1, mask)
    jax.block_until_ready(out)

    ref = _reference(Q, K, V1, mask)
    assert out.shape == ref.shape
    assert jnp.allclose(out, ref, atol=2e-3, rtol=2e-3), "mismatch vs reference"
    print("KERNEL_OK")
</pallas_src>

<mosaic_0001>
module attributes {stable_mosaic.version = 11 : i64} {
  func.func @_attn_single_tile_kernel(%arg0: i32, %arg1: memref<1x8x128xf32, #tpu.memory_space<vmem>>, %arg2: memref<1x8x128xf32, #tpu.memory_space<vmem>>, %arg3: memref<1x8x128xf32, #tpu.memory_space<vmem>>, %arg4: memref<1x8x8xf32, #tpu.memory_space<vmem>>, %arg5: memref<1x8x128xf32, #tpu.memory_space<vmem>>) attributes {dimension_semantics = [#tpu.dimension_semantics<parallel>], iteration_bounds = array<i64: 2>, scalar_prefetch = 0 : i64, scratch_operands = 0 : i64, tpu.core_type = #tpu.core_type<tc>, window_params = [{transform_indices = @transform_0, window_bounds = array<i64: 1, 8, 128>}, {transform_indices = @transform_1, window_bounds = array<i64: 1, 8, 128>}, {transform_indices = @transform_2, window_bounds = array<i64: 1, 8, 128>}, {transform_indices = @transform_3, window_bounds = array<i64: 1, 8, 8>}, {transform_indices = @transform_4, window_bounds = array<i64: 1, 8, 128>}]} {
    %c0 = arith.constant 0 : index
    %c0_0 = arith.constant 0 : index
    %c0_1 = arith.constant 0 : index
    %0 = vector.load %arg1[%c0, %c0_0, %c0_1] : memref<1x8x128xf32, #tpu.memory_space<vmem>>, vector<1x8x128xf32>
    %1 = vector.shape_cast %0 : vector<1x8x128xf32> to vector<8x128xf32>
    %c0_2 = arith.constant 0 : index
    %c0_3 = arith.constant 0 : index
    %c0_4 = arith.constant 0 : index
    %2 = vector.load %arg2[%c0_2, %c0_3, %c0_4] : memref<1x8x128xf32, #tpu.memory_space<vmem>>, vector<1x8x128xf32>
    %3 = vector.shape_cast %2 : vector<1x8x128xf32> to vector<8x128xf32>
    %c0_5 = arith.constant 0 : index
    %c0_6 = arith.constant 0 : index
    %c0_7 = arith.constant 0 : index
    %4 = vector.load %arg3[%c0_5, %c0_6, %c0_7] : memref<1x8x128xf32, #tpu.memory_space<vmem>>, vector<1x8x128xf32>
    %5 = vector.shape_cast %4 : vector<1x8x128xf32> to vector<8x128xf32>
    %cst = arith.constant dense<0.000000e+00> : vector<8x8xf32>
    %6 = tpu.matmul %1, %3, %cst {dimension_numbers = #tpu.dot_dimension_numbers<[1], [1], [0], [0], [0, 0, 1, 0], [], []>} : vector<8x128xf32>, vector<8x128xf32>, vector<8x8xf32> -> vector<8x8xf32>
    %cst_8 = arith.constant 0.176776692 : f32
    %7 = vector.broadcast %cst_8 : f32 to vector<8x8xf32>
    %8 = arith.mulf %6, %7 : vector<8x8xf32>
    %c0_9 = arith.constant 0 : index
    %c0_10 = arith.constant 0 : index
    %c0_11 = arith.constant 0 : index
    %9 = vector.load %arg4[%c0_9, %c0_10, %c0_11] : memref<1x8x8xf32, #tpu.memory_space<vmem>>, vector<1x8x8xf32>
    %10 = vector.shape_cast %9 : vector<1x8x8xf32> to vector<8x8xf32>
    %11 = arith.addf %8, %10 : vector<8x8xf32>
    %cst_12 = arith.constant dense<0xFF800000> : vector<8xf32>
    %12 = vector.multi_reduction <maximumf>, %11, %cst_12 [1] : vector<8x8xf32> to vector<8xf32>
    %13 = vector.shape_cast %12 : vector<8xf32> to vector<8x1xf32>
    %14 = vector.broadcast %13 : vector<8x1xf32> to vector<8x8xf32>
    %15 = arith.subf %11, %14 : vector<8x8xf32>
    %16 = math.exp %15 : vector<8x8xf32>
    %cst_13 = arith.constant dense<0.000000e+00> : vector<8xf32>
    %17 = vector.multi_reduction <add>, %16, %cst_13 [1] : vector<8x8xf32> to vector<8xf32>
    %18 = vector.shape_cast %17 : vector<8xf32> to vector<8x1xf32>
    %cst_14 = arith.constant dense<0.000000e+00> : vector<8x128xf32>
    %19 = tpu.matmul %16, %5, %cst_14 {dimension_numbers = #tpu.dot_dimension_numbers<[1], [0], [0], [1], [0, 0, 1, 1], [], []>} : vector<8x8xf32>, vector<8x128xf32>, vector<8x128xf32> -> vector<8x128xf32>
    %20 = tpu.reciprocal %18 : vector<8x1xf32> -> vector<8x1xf32>
    %21 = vector.broadcast %20 : vector<8x1xf32> to vector<8x128xf32>
    %22 = arith.mulf %19, %21 : vector<8x128xf32>
    %c0_15 = arith.constant 0 : index
    %c0_16 = arith.constant 0 : index
    %c0_17 = arith.constant 0 : index
    %23 = vector.load %arg5[%c0_15, %c0_16, %c0_17] : memref<1x8x128xf32, #tpu.memory_space<vmem>>, vector<1x8x128xf32>
    %24 = vector.shape_cast %23 : vector<1x8x128xf32> to vector<8x128xf32>
    %25 = vector.shape_cast %22 : vector<8x128xf32> to vector<1x8x128xf32>
    tpu.vector_store %arg5[%c0_15, %c0_16, %c0_17], %25 {strides = array<i32>} : memref<1x8x128xf32, #tpu.memory_space<vmem>>, vector<1x8x128xf32>,
    return
  }
  func.func @transform_0(%arg0: i32) -> (i32, i32, i32) {
    %c0_i32 = arith.constant 0 : i32
    %c0_i32_0 = arith.constant 0 : i32
    %c0_i32_1 = arith.constant 0 : i32
    return %arg0, %c0_i32, %c0_i32_0 : i32, i32, i32
  }
  func.func @transform_1(%arg0: i32) -> (i32, i32, i32) {
    %c0_i32 = arith.constant 0 : i32
    %c0_i32_0 = arith.constant 0 : i32
    %c0_i32_1 = arith.constant 0 : i32
    return %arg0, %c0_i32, %c0_i32_0 : i32, i32, i32
  }
  func.func @transform_2(%arg0: i32) -> (i32, i32, i32) {
    %c0_i32 = arith.constant 0 : i32
    %c0_i32_0 = arith.constant 0 : i32
    %c0_i32_1 = arith.constant 0 : i32
    return %arg0, %c0_i32, %c0_i32_0 : i32, i32, i32
  }
  func.func @transform_3(%arg0: i32) -> (i32, i32, i32) {
    %c0_i32 = arith.constant 0 : i32
    %c0_i32_0 = arith.constant 0 : i32
    %c0_i32_1 = arith.constant 0 : i32
    return %arg0, %c0_i32, %c0_i32_0 : i32, i32, i32
  }
  func.func @transform_4(%arg0: i32) -> (i32, i32, i32) {
    %c0_i32 = arith.constant 0 : i32
    %c0_i32_0 = arith.constant 0 : i32
    %c0_i32_1 = arith.constant 0 : i32
    return %arg0, %c0_i32, %c0_i32_0 : i32, i32, i32
  }
}

</mosaic_0001>

<llo_original>
// kernel: tpu_custom_call.1
$region0: #{tpu_custom_call.1}
  #allocation0 [shape = 'u32[]', space=smem, size = 0x4, offset = 0x4, fixed_abs, tag = 'smem constant byte address 0x4 - core index']
  #allocation1 [shape = 'u32[144,128]{1,0:T(1,128)}', space=vmem, size = 0x12000, scoped, tag = 'internal scratch']
  %s0 = inlined_call_operand.hbm [shape: f32[2,8,128], index: 0, kind: input, shape index: {}]
  %s1 = inlined_call_operand.hbm [shape: f32[2,8,128], index: 1, kind: input, shape index: {}]
  %s2 = inlined_call_operand.hbm [shape: f32[2,8,128], index: 2, kind: input, shape index: {}]
  %s3 = inlined_call_operand.hbm [shape: f32[2,8,8], index: 3, kind: input, shape index: {}]
  %s4 = inlined_call_operand.hbm [shape: f32[2,8,128], index: 4, kind: output, shape index: {}]
  %s5 = sld [smem:[#allocation0]]
  $region65: #{tpu_custom_call.1} parent=0
    _
  %s7 = ssub.s32 1, %s5
  %s8 = scalar_select 0, %s7, %s5
  $region1: #{tpu_custom_call.1} parent=0
    #allocation2 [shape = 'u8[8192]{0}', space=vmem, size = 0x2000, scoped, tag = 'input window, operand 0']
    #allocation3 [shape = 's32[2]{0}', space=sflag, size = 0x8, scoped, tag = 'scoped memory for tpu_custom_call.1']
    #allocation4 [shape = 's32[2]{0}', space=sflag, size = 0x8, scoped, tag = 'scoped memory for tpu_custom_call.1']
    #allocation5 [shape = 'u8[8192]{0}', space=vmem, size = 0x2000, scoped, tag = 'input window, operand 1']
    #allocation6 [shape = 's32[2]{0}', space=sflag, size = 0x8, scoped, tag = 'scoped memory for tpu_custom_call.1']
    #allocation7 [shape = 'u8[8192]{0}', space=vmem, size = 0x2000, scoped, tag = 'input window, operand 2']
    #allocation8 [shape = 'u8[8192]{0}', space=vmem, size = 0x2000, scoped, tag = 'input window, operand 3']
    #allocation9 [shape = 's32[2]{0}', space=sflag, size = 0x8, scoped, tag = 'scoped memory for tpu_custom_call.1']
    #allocation10 [shape = 'u8[8192]{0}', space=vmem, size = 0x2000, scoped, tag = 'output window, operand 0']
    %9 = vsyncpa [#allocation3], 0
    %s10 = scalar_lea.sflag [#allocation3], 1
    %11 = vsyncpa %s10, 0
    %12 = vsyncpa [#allocation6], 0
    %s13 = scalar_lea.sflag [#allocation6], 1
    %14 = vsyncpa %s13, 0
    %15 = vsyncpa [#allocation9], 0
    %s16 = scalar_lea.sflag [#allocation9], 1
    %17 = vsyncpa %s16, 0
    %18 = vsyncpa [#allocation4], 0
    %s19 = scalar_lea.sflag [#allocation4], 1
    %20 = vsyncpa %s19, 0
    loop: start=0, step=1, limit=4
    $region2: #{tpu_custom_call.1} parent=1 // loop_pre_header
      _
    $region3: #{tpu_custom_call.1} parent=1 // loop_header
      %s22 = sphi 0, %s26
      %p23 = scmp.ge.s32.totalorder %s22, 4
      %s32 = sphi 0, %s34
      %s35 = sphi 0, %s32
      %s36 = sphi 0, %s35
      %s52 = sphi 0, %s36
      %s58 = sphi 0, %s60
      %s61 = sphi 0, %s58
      %s62 = sphi 0, %s61
      %s78 = sphi 0, %s62
      %s84 = sphi 0, %s86
      %s87 = sphi 0, %s84
      %s88 = sphi 0, %s87
      %s104 = sphi 0, %s88
      %s110 = sphi 0, %s112
      %s113 = sphi 0, %s110
      %s114 = sphi 0, %s113
      %s130 = sphi 0, %s114
      %s136 = sphi 0, %s138
      %s139 = sphi 0, %s136
      %s140 = sphi 0, %s139
      %s156 = sphi 0, %s140
    $region4: #{tpu_custom_call.1} parent=1 // loop_header_branch
      %25 = sbr.rel (%p23) target = $region8
    $region5: #{tpu_custom_call.1} parent=1 // loop_body
      %s27 = ssub.s32 %s22, 1
      %s28 = ssub.s32 %s22, 2
      %s29 = sadd.s32 %s22, 1
      %s30 = ssub.s32 %s22, %s29
      %p31 = scmp.eq.s32.totalorder %s30, 0
      %s33 = sadd.s32 %s32, 1
      %s34 = scalar_select %p31, %s32, %s33
      %p37 = pneg %p31
      %p38 = scmp.eq.s32.totalorder %s22, 1
      %p39 = por %p37, %p38
      %p40 = scmp.ne.s32.totalorder %s32, %s35
      %p41 = scmp.eq.s32.totalorder %s22, 0
      %p42 = por %p40, %p41
      %p43 = scmp.ne.s32.totalorder %s32, %s35
      %p44 = scmp.eq.s32.totalorder %s27, 1
      %p45 = por %p43, %p44
      %p46 = scmp.ne.s32.totalorder %s35, %s36
      %p47 = scmp.eq.s32.totalorder %s27, 0
      %p48 = por %p46, %p47
      %p49 = scmp.ne.s32.totalorder %s35, %s36
      %p50 = scmp.eq.s32.totalorder %s28, 1
      %p51 = por %p49, %p50
      %p53 = scmp.ne.s32.totalorder %s36, %s52
      %p54 = scmp.eq.s32.totalorder %s28, 0
      %p55 = por %p53, %p54
      %s56 = ssub.s32 %s22, %s29
      %p57 = scmp.eq.s32.totalorder %s56, 0
      %s59 = sadd.s32 %s58, 1
      %s60 = scalar_select %p57, %s58, %s59
      %p63 = pneg %p57
      %p64 = scmp.eq.s32.totalorder %s22, 1
      %p65 = por %p63, %p64
      %p66 = scmp.ne.s32.totalorder %s58, %s61
      %p67 = scmp.eq.s32.totalorder %s22, 0
      %p68 = por %p66, %p67
      %p69 = scmp.ne.s32.totalorder %s58, %s61
      %p70 = scmp.eq.s32.totalorder %s27, 1
      %p71 = por %p69, %p70
      %p72 = scmp.ne.s32.totalorder %s61, %s62
      %p73 = scmp.eq.s32.totalorder %s27, 0
      %p74 = por %p72, %p73
      %p75 = scmp.ne.s32.totalorder %s61, %s62
      %p76 = scmp.eq.s32.totalorder %s28, 1
      %p77 = por %p75, %p76
      %p79 = scmp.ne.s32.totalorder %s62, %s78
      %p80 = scmp.eq.s32.totalorder %s28, 0
      %p81 = por %p79, %p80
      %s82 = ssub.s32 %s22, %s29
      %p83 = scmp.eq.s32.totalorder %s82, 0
      %s85 = sadd.s32 %s84, 1
      %s86 = scalar_select %p83, %s84, %s85
      %p89 = pneg %p83
      %p90 = scmp.eq.s32.totalorder %s22, 1
      %p91 = por %p89, %p90
      %p92 = scmp.ne.s32.totalorder %s84, %s87
      %p93 = scmp.eq.s32.totalorder %s22, 0
      %p94 = por %p92, %p93
      %p95 = scmp.ne.s32.totalorder %s84, %s87
      %p96 = scmp.eq.s32.totalorder %s27, 1
      %p97 = por %p95, %p96
      %p98 = scmp.ne.s32.totalorder %s87, %s88
      %p99 = scmp.eq.s32.totalorder %s27, 0
      %p100 = por %p98, %p99
      %p101 = scmp.ne.s32.totalorder %s87, %s88
      %p102 = scmp.eq.s32.totalorder %s28, 1
      %p103 = por %p101, %p102
      %p105 = scmp.ne.s32.totalorder %s88, %s104
      %p106 = scmp.eq.s32.totalorder %s28, 0
      %p107 = por %p105, %p106
      %s108 = ssub.s32 %s22, %s29
      %p109 = scmp.eq.s32.totalorder %s108, 0
      %s111 = sadd.s32 %s110, 1
      %s112 = scalar_select %p109, %s110, %s111
      %p115 = pneg %p109
      %p116 = scmp.eq.s32.totalorder %s22, 1
      %p117 = por %p115, %p116
      %p118 = scmp.ne.s32.totalorder %s110, %s113
      %p119 = scmp.eq.s32.totalorder %s22, 0
      %p120 = por %p118, %p119
      %p121 = scmp.ne.s32.totalorder %s110, %s113
      %p122 = scmp.eq.s32.totalorder %s27, 1
      %p123 = por %p121, %p122
      %p124 = scmp.ne.s32.totalorder %s113, %s114
      %p125 = scmp.eq.s32.totalorder %s27, 0
      %p126 = por %p124, %p125
      %p127 = scmp.ne.s32.totalorder %s113, %s114
      %p128 = scmp.eq.s32.totalorder %s28, 1
      %p129 = por %p127, %p128
      %p131 = scmp.ne.s32.totalorder %s114, %s130
      %p132 = scmp.eq.s32.totalorder %s28, 0
      %p133 = por %p131, %p132
      %s134 = ssub.s32 %s22, %s29
      %p135 = scmp.eq.s32.totalorder %s134, 0
      %s137 = sadd.s32 %s136, 1
      %s138 = scalar_select %p135, %s136, %s137
      %p141 = pneg %p135
      %p142 = scmp.eq.s32.totalorder %s22, 1
      %p143 = por %p141, %p142
      %p144 = scmp.ne.s32.totalorder %s136, %s139
      %p145 = scmp.eq.s32.totalorder %s22, 0
      %p146 = por %p144, %p145
      %p147 = scmp.ne.s32.totalorder %s136, %s139
      %p148 = scmp.eq.s32.totalorder %s27, 1
      %p149 = por %p147, %p148
      %p150 = scmp.ne.s32.totalorder %s139, %s140
      %p151 = scmp.eq.s32.totalorder %s27, 0
      %p152 = por %p150, %p151
      %p153 = scmp.ne.s32.totalorder %s139, %s140
      %p154 = scmp.eq.s32.totalorder %s28, 1
      %p155 = por %p153, %p154
      %p157 = scmp.ne.s32.totalorder %s140, %s156
      %p158 = scmp.eq.s32.totalorder %s28, 0
      %p159 = por %p157, %p158
      %p160 = scmp.le.s32.totalorder 1, %s22
      %p161 = scmp.lt.s32.totalorder %s22, 3
      %p162 = pnand %p160, %p161
      %p163 = pneg %p162
      // Predicated region
      $region9: #{tpu_custom_call.1} parent=5 // pred_check
        _
      $region10: #{tpu_custom_call.1} parent=5 // pred_check_branch
        %165 = sbr.rel (%p162) target = $region12
      $region11: #{tpu_custom_call.1} parent=5 // pred_region
        %s166 = ssub.s32 %s22, 1
      $region12: #{tpu_custom_call.1} parent=5 // pred_fallthru
        _
      %p167 = scmp.lt.s32.totalorder %s22, 2
      // Predicated region
      $region13: #{tpu_custom_call.1} parent=5 // pred_check
        %p168 = pneg %p167
      $region14: #{tpu_custom_call.1} parent=5 // pred_check_branch
        %170 = sbr.rel (%p168) target = $region16
      $region15: #{tpu_custom_call.1} parent=5 // pred_region
        // Predicated region
        $region17: #{tpu_custom_call.1} parent=15 // pred_check
          %p171 = pneg %p42
        $region18: #{tpu_custom_call.1} parent=15 // pred_check_branch
          %173 = sbr.rel (%p171) target = $region20
        $region19: #{tpu_custom_call.1} parent=15 // pred_region
          %s174 = sand.u32 %s32, 1
          %s175 = scalar_lea.sflag [#allocation3], %s174
          %s176 = sand.u32 %s32, 1
          %s177 = smul.addr %s176, 8
          %s178 = scalar_lea.vmem [#allocation2], %s177
          %s180 = ssub.s32 128, 128
          %181 = vsyncadd %s175, %s180
          %s182 = smul.addr %s22, 128
          %s183 = scalar_lea.hbm %s0, %s182
          %s185 = sshll.u32 %s178, 4
          %s186 = int_to_ptr.vmem [resolvable:$true] %s185
          %188 = dma.hbm_to_vmem [thread:$0]  %s183, 128, %s186, %s175
        $region20: #{tpu_custom_call.1} parent=15 // pred_fallthru
          _
        // Predicated region
        $region21: #{tpu_custom_call.1} parent=15 // pred_check
          %p189 = pneg %p68
        $region22: #{tpu_custom_call.1} parent=15 // pred_check_branch
          %191 = sbr.rel (%p189) target = $region24
        $region23: #{tpu_custom_call.1} parent=15 // pred_region
          %s192 = sand.u32 %s22, 1
          %s193 = scalar_lea.sflag [#allocation6], %s192
          %s194 = sand.u32 %s58, 1
          %s195 = smul.addr %s194, 8
          %s196 = scalar_lea.vmem [#allocation5], %s195
          %s198 = ssub.s32 128, 128
          %199 = vsyncadd %s193, %s198
          %s200 = smul.addr %s22, 128
          %s201 = scalar_lea.hbm %s1, %s200
          %s203 = sshll.u32 %s196, 4
          %s204 = int_to_ptr.vmem [resolvable:$true] %s203
          %206 = dma.hbm_to_vmem [thread:$0]  %s201, 128, %s204, %s193
        $region24: #{tpu_custom_call.1} parent=15 // pred_fallthru
          _
        // Predicated region
        $region25: #{tpu_custom_call.1} parent=15 // pred_check
          %p207 = pneg %p94
        $region26: #{tpu_custom_call.1} parent=15 // pred_check_branch
          %209 = sbr.rel (%p207) target = $region28
        $region27: #{tpu_custom_call.1} parent=15 // pred_region
          %s210 = sand.u32 %s22, 1
          %s211 = scalar_lea.sflag [#allocation6], %s210
          %s212 = sand.u32 %s84, 1
          %s213 = smul.addr %s212, 8
          %s214 = scalar_lea.vmem [#allocation7], %s213
          %s216 = ssub.s32 128, 128
          %217 = vsyncadd %s211, %s216
          %s218 = smul.addr %s22, 128
          %s219 = scalar_lea.hbm %s2, %s218
          %s221 = sshll.u32 %s214, 4
          %s222 = int_to_ptr.vmem [resolvable:$true] %s221
          %224 = dma.hbm_to_vmem [thread:$0]  %s219, 128, %s222, %s211
        $region28: #{tpu_custom_call.1} parent=15 // pred_fallthru
          _
        // Predicated region
        $region29: #{tpu_custom_call.1} parent=15 // pred_check
          %p225 = pneg %p120
        $region30: #{tpu_custom_call.1} parent=15 // pred_check_branch
          %227 = sbr.rel (%p225) target = $region32
        $region31: #{tpu_custom_call.1} parent=15 // pred_region
          %s228 = sand.u32 %s110, 1
          %s229 = scalar_lea.sflag [#allocation9], %s228
          %s230 = sand.u32 %s110, 1
          %s231 = smul.addr %s230, 8
          %s232 = scalar_lea.vmem [#allocation8], %s231
          %s234 = ssub.s32 128, 128
          %235 = vsyncadd %s229, %s234
          %s236 = smul.addr %s22, 128
          %s237 = scalar_lea.hbm %s3, %s236
          %s239 = sshll.u32 %s232, 4
          %s240 = int_to_ptr.vmem [resolvable:$true] %s239
          %242 = dma.hbm_to_vmem [thread:$0]  %s237, 128, %s240, %s229
        $region32: #{tpu_custom_call.1} parent=15 // pred_fallthru
          _
      $region16: #{tpu_custom_call.1} parent=5 // pred_fallthru
        _
      %p243 = scmp.le.s32.totalorder 1, %s22
      %p244 = scmp.lt.s32.totalorder %s22, 3
      %p245 = pnand %p243, %p244
      %p246 = pneg %p245
      // Predicated region
      $region33: #{tpu_custom_call.1} parent=5 // pred_check
        _
      $region34: #{tpu_custom_call.1} parent=5 // pred_check_branch
        %248 = sbr.rel (%p245) target = $region36
      $region35: #{tpu_custom_call.1} parent=5 // pred_region
        %s249 = ssub.s32 %s22, 1
        %s250 = sand.u32 %s35, 1
        %s251 = scalar_lea.sflag [#allocation3], %s250
        %s252 = sand.u32 %s35, 1
        %s253 = smul.addr %s252, 8
        %s254 = scalar_lea.vmem [#allocation2], %s253
        // Predicated region
        $region37: #{tpu_custom_call.1} parent=35 // pred_check
          %p255 = pneg %p48
        $region38: #{tpu_custom_call.1} parent=35 // pred_check_branch
          %257 = sbr.rel (%p255) target = $region40
        $region39: #{tpu_custom_call.1} parent=35 // pred_region
          %258 = dma.done %s251, 128
        $region40: #{tpu_custom_call.1} parent=35 // pred_fallthru
          _
        %s259 = sand.u32 %s27, 1
        %s260 = scalar_lea.sflag [#allocation6], %s259
        %s261 = sand.u32 %s61, 1
        %s262 = smul.addr %s261, 8
        %s263 = scalar_lea.vmem [#allocation5], %s262
        // Predicated region
        $region41: #{tpu_custom_call.1} parent=35 // pred_check
          %p264 = pneg %p74
        $region42: #{tpu_custom_call.1} parent=35 // pred_check_branch
          %266 = sbr.rel (%p264) target = $region44
        $region43: #{tpu_custom_call.1} parent=35 // pred_region
          %267 = dma.done %s260, 128
        $region44: #{tpu_custom_call.1} parent=35 // pred_fallthru
          _
        %s268 = sand.u32 %s27, 1
        %s269 = scalar_lea.sflag [#allocation6], %s268
        %s270 = sand.u32 %s87, 1
        %s271 = smul.addr %s270, 8
        %s272 = scalar_lea.vmem [#allocation7], %s271
        // Predicated region
        $region45: #{tpu_custom_call.1} parent=35 // pred_check
          %p273 = pneg %p100
        $region46: #{tpu_custom_call.1} parent=35 // pred_check_branch
          %275 = sbr.rel (%p273) target = $region48
        $region47: #{tpu_custom_call.1} parent=35 // pred_region
          %276 = dma.done %s269, 128
        $region48: #{tpu_custom_call.1} parent=35 // pred_fallthru
          _
        %s277 = sand.u32 %s113, 1
        %s278 = scalar_lea.sflag [#allocation9], %s277
        %s279 = sand.u32 %s113, 1
        %s280 = smul.addr %s279, 8
        %s281 = scalar_lea.vmem [#allocation8], %s280
        // Predicated region
        $region49: #{tpu_custom_call.1} parent=35 // pred_check
          %p282 = pneg %p126
        $region50: #{tpu_custom_call.1} parent=35 // pred_check_branch
          %284 = sbr.rel (%p282) target = $region52
        $region51: #{tpu_custom_call.1} parent=35 // pred_region
          %285 = dma.done %s278, 128
        $region52: #{tpu_custom_call.1} parent=35 // pred_fallthru
          _
        %s286 = sand.u32 %s35, 1
        %s287 = scalar_lea.sflag [#allocation3], %s286
        %s288 = sand.u32 %s35, 1
        %s289 = smul.addr %s288, 8
        %s290 = scalar_lea.vmem [#allocation2], %s289
        %p291 = pneg %p48
        %p292 = pneg %p45
        %s293 = sand.u32 %s27, 1
        %s294 = scalar_lea.sflag [#allocation6], %s293
        %s295 = sand.u32 %s61, 1
        %s296 = smul.addr %s295, 8
        %s297 = scalar_lea.vmem [#allocation5], %s296
        %p298 = pneg %p74
        %p299 = pneg %p71
        %s300 = sand.u32 %s27, 1
        %s301 = scalar_lea.sflag [#allocation6], %s300
        %s302 = sand.u32 %s87, 1
        %s303 = smul.addr %s302, 8
        %s304 = scalar_lea.vmem [#allocation7], %s303
        %p305 = pneg %p100
        %p306 = pneg %p97
        %s307 = sand.u32 %s113, 1
        %s308 = scalar_lea.sflag [#allocation9], %s307
        %s309 = sand.u32 %s113, 1
        %s310 = smul.addr %s309, 8
        %s311 = scalar_lea.vmem [#allocation8], %s310
        %p312 = pneg %p126
        %p313 = pneg %p123
        %p314 = pneg %p152
        %p315 = pneg %p149
        %s316 = sand.u32 %s139, 1
        %s317 = scalar_lea.sflag [#allocation4], %s316
        %s318 = sand.u32 %s139, 1
        %s319 = smul.addr %s318, 8
        %s320 = scalar_lea.vmem [#allocation10], %s319
        %v321 = vld [vmem:[%s254] sm:$0xff]
        %v322 = vld [vmem:[%s263] sm:$0xff]
        %v323 = vld [vmem:[%s272] sm:$0xff]
        %324 = vmatprep.subr.mxu0 0.0
        %325 = vmatpush1.xpose.msra.mxu0 %v322
        %326 = vmatprep.subr.mxu0 0.0
        %327 = vmatpush1.xpose.msra.mxu0 0.0
        %328 = vmatprep.subr.mxu0 0.0
        %329 = vmatpush1.xpose.msra.mxu0 0.0
        %330 = vmatprep.subr.mxu0 0.0
        %331 = vmatpush1.xpose.msra.mxu0 0.0
        %332 = vmatprep.subr.mxu0 0.0
        %333 = vmatpush1.xpose.msra.mxu0 0.0
        %334 = vmatprep.subr.mxu0 0.0
        %335 = vmatpush1.xpose.msra.mxu0 0.0
        %336 = vmatprep.subr.mxu0 0.0
        %337 = vmatpush1.xpose.msra.mxu0 0.0
        %338 = vmatprep.subr.mxu0 0.0
        %339 = vmatpush1.xpose.msra.mxu0 0.0
        %340 = vmatprep.subr.mxu0 0.0
        %341 = vmatpush1.xpose.msra.mxu0 0.0
        %342 = vmatprep.subr.mxu0 0.0
        %343 = vmatpush1.xpose.msra.mxu0 0.0
        %344 = vmatprep.subr.mxu0 0.0
        %345 = vmatpush1.xpose.msra.mxu0 0.0
        %346 = vmatprep.subr.mxu0 0.0
        %347 = vmatpush1.xpose.msra.mxu0 0.0
        %348 = vmatprep.subr.mxu0 0.0
        %349 = vmatpush1.xpose.msra.mxu0 0.0
        %350 = vmatprep.subr.mxu0 0.0
        %351 = vmatpush1.xpose.msra.mxu0 0.0
        %352 = vmatprep.subr.mxu0 0.0
        %353 = vmatpush1.xpose.msra.mxu0 0.0
        %354 = vmatprep.subr.mxu0 0.0
        %355 = vmatpush1.xpose.msra.mxu0 0.0
        %356 = vmatprep.subr.mxu0 0.0
        %357 = vmatpush1.xpose.msra.mxu0 0.0
        %358 = vmatprep.subr.mxu0 0.0
        %359 = vmatpush1.xpose.msra.mxu0 0.0
        %360 = vmatprep.subr.mxu0 0.0
        %361 = vmatpush1.xpose.msra.mxu0 0.0
        %362 = vmatprep.subr.mxu0 0.0
        %363 = vmatpush1.xpose.msra.mxu0 0.0
        %364 = vmatprep.subr.mxu0 0.0
        %365 = vmatpush1.xpose.msra.mxu0 0.0
        %366 = vmatprep.subr.mxu0 0.0
        %367 = vmatpush1.xpose.msra.mxu0 0.0
        %368 = vmatprep.subr.mxu0 0.0
        %369 = vmatpush1.xpose.msra.mxu0 0.0
        %370 = vmatprep.subr.mxu0 0.0
        %371 = vmatpush1.xpose.msra.mxu0 0.0
        %372 = vmatprep.subr.mxu0 0.0
        %373 = vmatpush1.xpose.msra.mxu0 0.0
        %374 = vmatprep.subr.mxu0 0.0
        %375 = vmatpush1.xpose.msra.mxu0 0.0
        %376 = vmatprep.subr.mxu0 0.0
        %377 = vmatpush1.xpose.msra.mxu0 0.0
        %378 = vmatprep.subr.mxu0 0.0
        %379 = vmatpush1.xpose.msra.mxu0 0.0
        %380 = vmatprep.subr.mxu0 0.0
        %381 = vmatpush1.xpose.msra.mxu0 0.0
        %382 = vmatprep.subr.mxu0 0.0
        %383 = vmatpush1.xpose.msra.mxu0 0.0
        %384 = vmatprep.subr.mxu0 0.0
        %385 = vmatpush1.xpose.msra.mxu0 0.0
        %386 = vmatprep.subr.mxu0 0.0
        %387 = vmatpush1.xpose.msra.mxu0 0.0
        %388 = vmatprep.mubr.f32.mxu0 0.0
        %389 = vmatmul.mubr.f32.gmra.mrb[0].mxu0 %v321
        %v390 = vpop.f32.mrb[0].mxu0
        %v391 = vadd.f32 0.0, %v390
        %v392 = vpop.f32.mrb[0].mxu0
        %393 = vdwg.mxu0
        %v394 = vmul.f32 %v391, 0.17677669
        %v395 = vld [vmem:[%s281] sm:$0xff]
        %v396 = vadd.f32 %v394, %v395
        %vm397 = vcmask 64512
        %v398 = vsel %vm397, %v396, -inf
        %399 = vmax.xlane.f32.xlu0 %v398
        %v400 = vpop.xlane.xlu0 %399
        %v401 = vsub.f32 %v396, %v400
        %v402 = vmul.f32 %v401, 1.442695
        %v403 = vpow.pop %v402
        %v404 = vsel %vm397, %v403, 0.0
        %405 = vadd.xlane.f32.xlu0 %v404
        %v406 = vpop.xlane.xlu0 %405
        %v408 = vsel %vm397, %v403, 0
        %410 = vmatprep.subr.mxu0 0.0
        %411 = vmatpush1.msra.mxu0 %v323
        %412 = vmatprep.subr.mxu0 0.0
        %413 = vmatpush1.msra.mxu0 0.0
        %414 = vmatprep.subr.mxu0 0.0
        %415 = vmatpush1.msra.mxu0 0.0
        %416 = vmatprep.subr.mxu0 0.0
        %417 = vmatpush1.msra.mxu0 0.0
        %418 = vmatprep.subr.mxu0 0.0
        %419 = vmatpush1.msra.mxu0 0.0
        %420 = vmatprep.subr.mxu0 0.0
        %421 = vmatpush1.msra.mxu0 0.0
        %422 = vmatprep.subr.mxu0 0.0
        %423 = vmatpush1.msra.mxu0 0.0
        %424 = vmatprep.subr.mxu0 0.0
        %425 = vmatpush1.msra.mxu0 0.0
        %426 = vmatprep.subr.mxu0 0.0
        %427 = vmatpush1.msra.mxu0 0.0
        %428 = vmatprep.subr.mxu0 0.0
        %429 = vmatpush1.msra.mxu0 0.0
        %430 = vmatprep.subr.mxu0 0.0
        %431 = vmatpush1.msra.mxu0 0.0
        %432 = vmatprep.subr.mxu0 0.0
        %433 = vmatpush1.msra.mxu0 0.0
        %434 = vmatprep.subr.mxu0 0.0
        %435 = vmatpush1.msra.mxu0 0.0
        %436 = vmatprep.subr.mxu0 0.0
        %437 = vmatpush1.msra.mxu0 0.0
        %438 = vmatprep.subr.mxu0 0.0
        %439 = vmatpush1.msra.mxu0 0.0
        %440 = vmatprep.subr.mxu0 0.0
        %441 = vmatpush1.msra.mxu0 0.0
        %442 = vmatprep.subr.mxu0 0.0
        %443 = vmatpush1.msra.mxu0 0.0
        %444 = vmatprep.subr.mxu0 0.0
        %445 = vmatpush1.msra.mxu0 0.0
        %446 = vmatprep.subr.mxu0 0.0
        %447 = vmatpush1.msra.mxu0 0.0
        %448 = vmatprep.subr.mxu0 0.0
        %449 = vmatpush1.msra.mxu0 0.0
        %450 = vmatprep.subr.mxu0 0.0
        %451 = vmatpush1.msra.mxu0 0.0
        %452 = vmatprep.subr.mxu0 0.0
        %453 = vmatpush1.msra.mxu0 0.0
        %454 = vmatprep.subr.mxu0 0.0
        %455 = vmatpush1.msra.mxu0 0.0
        %456 = vmatprep.subr.mxu0 0.0
        %457 = vmatpush1.msra.mxu0 0.0
        %458 = vmatprep.subr.mxu0 0.0
        %459 = vmatpush1.msra.mxu0 0.0
        %460 = vmatprep.subr.mxu0 0.0
        %461 = vmatpush1.msra.mxu0 0.0
        %462 = vmatprep.subr.mxu0 0.0
        %463 = vmatpush1.msra.mxu0 0.0
        %464 = vmatprep.subr.mxu0 0.0
        %465 = vmatpush1.msra.mxu0 0.0
        %466 = vmatprep.subr.mxu0 0.0
        %467 = vmatpush1.msra.mxu0 0.0
        %468 = vmatprep.subr.mxu0 0.0
        %469 = vmatpush1.msra.mxu0 0.0
        %470 = vmatprep.subr.mxu0 0.0
        %471 = vmatpush1.msra.mxu0 0.0
        %472 = vmatprep.subr.mxu0 0.0
        %473 = vmatpush1.msra.mxu0 0.0
        %474 = vmatprep.mubr.f32.mxu0 0.0
        %475 = vmatmul.mubr.f32.gmra.mrb[0].mxu0 %v408
        %v476 = vpop.f32.mrb[0].mxu0
        %v477 = vadd.f32 0.0, %v476
        %v478 = vpop.f32.mrb[0].mxu0
        %479 = vdwg.mxu0
        %v480 = vrcp.pop %v406
        %v481 = vmul.f32 %v477, %v480
        %482 = vst [vmem:[%s320] sm:$0xff] %v481
        %s483 = sand.u32 %s139, 1
        %s484 = scalar_lea.sflag [#allocation4], %s483
        %s485 = sand.u32 %s139, 1
        %s486 = smul.addr %s485, 8
        %s487 = scalar_lea.vmem [#allocation10], %s486
        // Predicated region
        $region53: #{tpu_custom_call.1} parent=35 // pred_check
          %p488 = pneg %p149
        $region54: #{tpu_custom_call.1} parent=35 // pred_check_branch
          %490 = sbr.rel (%p488) target = $region56
        $region55: #{tpu_custom_call.1} parent=35 // pred_region
          %s492 = ssub.s32 128, 128
          %493 = vsyncadd %s484, %s492
          %s494 = smul.addr %s27, 128
          %s495 = scalar_lea.hbm %s4, %s494
          %s497 = sshll.u32 %s487, 4
          %s498 = int_to_ptr.vmem [resolvable:$true] %s497
          %500 = dma.vmem_to_hbm [thread:$0]  %s498, 128, %s495, %s484
        $region56: #{tpu_custom_call.1} parent=35 // pred_fallthru
          _
      $region36: #{tpu_custom_call.1} parent=5 // pred_fallthru
        _
      %p501 = scmp.le.s32.totalorder 2, %s22
      // Predicated region
      $region57: #{tpu_custom_call.1} parent=5 // pred_check
        %p502 = pneg %p501
      $region58: #{tpu_custom_call.1} parent=5 // pred_check_branch
        %504 = sbr.rel (%p502) target = $region60
      $region59: #{tpu_custom_call.1} parent=5 // pred_region
        %s505 = ssub.s32 %s22, 2
        // Predicated region
        $region61: #{tpu_custom_call.1} parent=59 // pred_check
          %p506 = pneg %p155
        $region62: #{tpu_custom_call.1} parent=59 // pred_check_branch
          %508 = sbr.rel (%p506) target = $region64
        $region63: #{tpu_custom_call.1} parent=59 // pred_region
          %s509 = sand.u32 %s140, 1
          %s510 = scalar_lea.sflag [#allocation4], %s509
          %s511 = sand.u32 %s140, 1
          %s512 = smul.addr %s511, 8
          %s513 = scalar_lea.vmem [#allocation10], %s512
          %514 = dma.done %s510, 128
        $region64: #{tpu_custom_call.1} parent=59 // pred_fallthru
          _
      $region60: #{tpu_custom_call.1} parent=5 // pred_fallthru
        _
    $region6: #{tpu_custom_call.1} parent=1 // loop_footer
      %s26 = sadd.s32 1, %s22
    $region7: #{tpu_custom_call.1} parent=1 // loop_footer_branch
      %21 = sbr.rel target = $region3
    $region8: #{tpu_custom_call.1} parent=1 // loop_exit
      _
    %515 = vsyncpa [#allocation3], 1
    %s516 = scalar_lea.sflag [#allocation3], 1
    %517 = vsyncpa %s516, 1
    %518 = vsyncpa [#allocation6], 1
    %s519 = scalar_lea.sflag [#allocation6], 1
    %520 = vsyncpa %s519, 1
    %521 = vsyncpa [#allocation9], 1
    %s522 = scalar_lea.sflag [#allocation9], 1
    %523 = vsyncpa %s522, 1
    %524 = vsyncpa [#allocation4], 1
    %s525 = scalar_lea.sflag [#allocation4], 1
    %526 = vsyncpa %s525, 1

</llo_original>
